<compile_context>
chip_gen: v5e
topology: v5e:2x2
jax: 0.10.0
libtpu: 0.0.40
codegen_flags: <defaults>
</compile_context>

<pallas_src>
from functools import partial

import jax
import jax.numpy as jnp
from jax.experimental import pallas as pl
from jax.experimental.pallas import tpu as pltpu


LANES = 1024       # lane-dense last dim (multiple of 128) -> unmasked wide vst
BLOCK_ROWS = 512   # (512, 1024) f32 block = 2 MiB/array/step


def _div_kernel(x_ref, o_ref, out_ref, *, max_value):
    rec = pl.reciprocal(o_ref[...], approx=True)   # EUP vrcp, its own VLIW slot
    if max_value is not None:
        rec = jnp.clip(rec, -max_value, max_value)
    out_ref[...] = x_ref[...] * rec


def _round_up(n, m):
    return ((n + m - 1) // m) * m


def segment_lut_div(x, other, *, reciprocal_max_value=None,
                    lanes=LANES, block_rows=BLOCK_ROWS):
    """out = x * clamp(1/other, -max, +max)  (SegmentLUTDiv.forward, float semantics)."""
    if not isinstance(other, jnp.ndarray):
        # forward()'s scalar branch: rec = 1 / other, plain multiply (no hot path)
        return x * (1.0 / other)

    other = jnp.broadcast_to(other, x.shape).astype(x.dtype)
    orig_shape = x.shape
    total = x.size

    # keep sublane tile a multiple of 8
    block_rows = max(8, _round_up(block_rows, 8))

    # Flatten to a lane-dense 2-D slab [rows, lanes]; pad so blocks tile evenly.
    x_flat = x.reshape(-1)
    o_flat = other.reshape(-1)

    padded = _round_up(total, lanes)
    rows = padded // lanes
    if rows > block_rows:
        rows = _round_up(rows, block_rows)
        padded = rows * lanes
        tr = block_rows
    else:
        # single block covering the whole (small) array -> always legal
        tr = rows

    if padded != total:
        pad = padded - total
        x_flat = jnp.concatenate([x_flat, jnp.zeros((pad,), x.dtype)])
        # pad the divisor with 1.0 so the reciprocal stays finite in the pad region
        o_flat = jnp.concatenate([o_flat, jnp.ones((pad,), x.dtype)])

    x2 = x_flat.reshape(rows, lanes)
    o2 = o_flat.reshape(rows, lanes)
    grid = (rows // tr,)

    kernel = partial(_div_kernel, max_value=reciprocal_max_value)

    out2 = pl.pallas_call(
        kernel,
        out_shape=jax.ShapeDtypeStruct((rows, lanes), x.dtype),
        grid_spec=pltpu.PrefetchScalarGridSpec(
            num_scalar_prefetch=0,
            grid=grid,
            in_specs=[
                pl.BlockSpec((tr, lanes), lambda i: (i, 0)),
                pl.BlockSpec((tr, lanes), lambda i: (i, 0)),
            ],
            out_specs=pl.BlockSpec((tr, lanes), lambda i: (i, 0)),
        ),
        compiler_params=pltpu.CompilerParams(
            dimension_semantics=("parallel",)),
    )(x2, o2)

    out_flat = out2.reshape(-1)
    if padded != total:
        out_flat = out_flat[:total]
    return out_flat.reshape(orig_shape)


def _reference(x, other, max_value):
    rec = 1.0 / other
    if max_value is not None:
        rec = jnp.clip(rec, -max_value, max_value)
    return x * rec


if __name__ == "__main__":
    key = jax.random.PRNGKey(0)
    k1, k2, k3, k4, k5, k6 = jax.random.split(key, 6)

    reciprocal_max_value = 8.0  # module __init__ arg

    # approx=True reciprocal is ~1e-3 relative; the op modeled is itself a
    # segment-LUT approximation of 1/x, so a loose tolerance is appropriate.
    RTOL, ATOL = 2e-2, 1e-3

    # --- Test 1: small NCHW, aligned size (2048 elems -> single block) ---
    N, C, H, W = 2, 4, 16, 16
    x = jax.random.normal(k1, (N, C, H, W), dtype=jnp.float32)
    other = jax.random.uniform(k2, (N, C, H, W), dtype=jnp.float32,
                               minval=0.25, maxval=4.0)
    out = jax.block_until_ready(
        segment_lut_div(x, other, reciprocal_max_value=reciprocal_max_value))
    ref = _reference(x, other, reciprocal_max_value)
    assert jnp.allclose(out, ref, rtol=RTOL, atol=ATOL), "mismatch (aligned case)"

    # --- Test 2: awkward size (1155 elems) -> exercises lane padding ---
    xa = jax.random.normal(k3, (3, 5, 7, 11), dtype=jnp.float32)
    oa = jax.random.uniform(k4, (3, 5, 7, 11), dtype=jnp.float32,
                            minval=0.25, maxval=4.0)
    outa = jax.block_until_ready(
        segment_lut_div(xa, oa, reciprocal_max_value=reciprocal_max_value))
    refa = _reference(xa, oa, reciprocal_max_value)
    assert jnp.allclose(outa, refa, rtol=RTOL, atol=ATOL), "mismatch (padded case)"

    # --- Test 3: multi-block grid (force small block_rows to exercise grid>1) ---
    xb = jax.random.normal(k5, (4, 4, 32, 32), dtype=jnp.float32)
    ob = jax.random.uniform(k6, (4, 4, 32, 32), dtype=jnp.float32,
                            minval=0.25, maxval=4.0)
    outb = jax.block_until_ready(
        segment_lut_div(xb, ob, reciprocal_max_value=reciprocal_max_value,
                        block_rows=8))
    refb = _reference(xb, ob, reciprocal_max_value)
    assert jnp.allclose(outb, refb, rtol=RTOL, atol=ATOL), "mismatch (multi-block case)"

    # --- Test 4: scalar `other` branch of forward() ---
    out_s = jax.block_until_ready(segment_lut_div(x, 2.0))
    assert jnp.allclose(out_s, x / 2.0, rtol=1e-6, atol=1e-6), "mismatch (scalar case)"

    print("KERNEL_OK")
</pallas_src>

<mosaic_0001>
module attributes {stable_mosaic.version = 11 : i64} {
  func.func @_div_kernel(%arg0: i32, %arg1: memref<2x1024xf32, #tpu.memory_space<vmem>>, %arg2: memref<2x1024xf32, #tpu.memory_space<vmem>>, %arg3: memref<2x1024xf32, #tpu.memory_space<vmem>>) attributes {dimension_semantics = [#tpu.dimension_semantics<parallel>], iteration_bounds = array<i64: 1>, scalar_prefetch = 0 : i64, scratch_operands = 0 : i64, tpu.core_type = #tpu.core_type<tc>, window_params = [{transform_indices = @transform_0, window_bounds = array<i64: 2, 1024>}, {transform_indices = @transform_1, window_bounds = array<i64: 2, 1024>}, {transform_indices = @transform_2, window_bounds = array<i64: 2, 1024>}]} {
    %c0 = arith.constant 0 : index
    %c0_0 = arith.constant 0 : index
    %0 = vector.load %arg2[%c0, %c0_0] : memref<2x1024xf32, #tpu.memory_space<vmem>>, vector<2x1024xf32>
    %1 = tpu.reciprocal %0 {approx = true} : vector<2x1024xf32> -> vector<2x1024xf32>
    %cst = arith.constant -8.000000e+00 : f32
    %cst_1 = arith.constant 8.000000e+00 : f32
    %2 = vector.broadcast %cst : f32 to vector<2x1024xf32>
    %3 = arith.maximumf %2, %1 : vector<2x1024xf32>
    %4 = vector.broadcast %cst_1 : f32 to vector<2x1024xf32>
    %5 = arith.minimumf %4, %3 : vector<2x1024xf32>
    %c0_2 = arith.constant 0 : index
    %c0_3 = arith.constant 0 : index
    %6 = vector.load %arg1[%c0_2, %c0_3] : memref<2x1024xf32, #tpu.memory_space<vmem>>, vector<2x1024xf32>
    %7 = arith.mulf %6, %5 : vector<2x1024xf32>
    %c0_4 = arith.constant 0 : index
    %c0_5 = arith.constant 0 : index
    %8 = vector.load %arg3[%c0_4, %c0_5] : memref<2x1024xf32, #tpu.memory_space<vmem>>, vector<2x1024xf32>
    tpu.vector_store %arg3[%c0_4, %c0_5], %7 {strides = array<i32>} : memref<2x1024xf32, #tpu.memory_space<vmem>>, vector<2x1024xf32>,
    return
  }
  func.func @transform_0(%arg0: i32) -> (i32, i32) {
    %c0_i32 = arith.constant 0 : i32
    %c0_i32_0 = arith.constant 0 : i32
    return %arg0, %c0_i32 : i32, i32
  }
  func.func @transform_1(%arg0: i32) -> (i32, i32) {
    %c0_i32 = arith.constant 0 : i32
    %c0_i32_0 = arith.constant 0 : i32
    return %arg0, %c0_i32 : i32, i32
  }
  func.func @transform_2(%arg0: i32) -> (i32, i32) {
    %c0_i32 = arith.constant 0 : i32
    %c0_i32_0 = arith.constant 0 : i32
    return %arg0, %c0_i32 : i32, i32
  }
}

</mosaic_0001>

<llo_original>
// kernel: tpu_custom_call.1
$region0: #{tpu_custom_call.1}
  #allocation0 [shape = 'u32[]', space=smem, size = 0x4, offset = 0x4, fixed_abs, tag = 'smem constant byte address 0x4 - core index']
  #allocation1 [shape = 'u32[72,128]{1,0:T(1,128)}', space=vmem, size = 0x9000, scoped, tag = 'internal scratch']
  %s0 = inlined_call_operand.hbm [shape: f32[2,1024], index: 0, kind: input, shape index: {}]
  %s1 = inlined_call_operand.hbm [shape: f32[2,1024], index: 1, kind: input, shape index: {}]
  %s2 = inlined_call_operand.hbm [shape: f32[2,1024], index: 2, kind: output, shape index: {}]
  %s3 = sld [smem:[#allocation0]]
  $region26: #{tpu_custom_call.1} parent=0
    _
  %s5 = ssub.s32 1, %s3
  %s6 = scalar_select 0, %s5, %s3
  $region1: #{tpu_custom_call.1} parent=0
    #allocation2 [shape = 'u8[8192]{0}', space=vmem, size = 0x2000, scoped, tag = 'input window, operand 0, single buffered']
    #allocation3 [shape = 's32[1]{0}', space=sflag, size = 0x4, scoped, tag = 'scoped memory for tpu_custom_call.1']
    #allocation4 [shape = 's32[1]{0}', space=sflag, size = 0x4, scoped, tag = 'scoped memory for tpu_custom_call.1']
    #allocation5 [shape = 'u8[8192]{0}', space=vmem, size = 0x2000, scoped, tag = 'input window, operand 1, single buffered']
    #allocation6 [shape = 's32[1]{0}', space=sflag, size = 0x4, scoped, tag = 'scoped memory for tpu_custom_call.1']
    #allocation7 [shape = 'u8[8192]{0}', space=vmem, size = 0x2000, scoped, tag = 'output window, operand 0, single buffered']
    %7 = vsyncpa [#allocation3], 0
    %8 = vsyncpa [#allocation6], 0
    %9 = vsyncpa [#allocation4], 0
    // Predicated region
    $region2: #{tpu_custom_call.1} parent=1 // pred_check
      _
    $region3: #{tpu_custom_call.1} parent=1 // pred_check_branch
      %11 = sbr.rel (0) target = $region5
    $region4: #{tpu_custom_call.1} parent=1 // pred_region
      %13 = vsyncadd [#allocation3], 0
      %s15 = sshll.u32 %s0, 4
      %s16 = int_to_ptr.hbm [resolvable:$true] %s15
      %s17 = sshll.u32 [#allocation2], 4
      %s18 = int_to_ptr.vmem [resolvable:$true] %s17
      %20 = dma.hbm_to_vmem [thread:$0]  %s16, 256, %s18, [#allocation3]
    $region5: #{tpu_custom_call.1} parent=1 // pred_fallthru
      _
    // Predicated region
    $region6: #{tpu_custom_call.1} parent=1 // pred_check
      _
    $region7: #{tpu_custom_call.1} parent=1 // pred_check_branch
      %22 = sbr.rel (0) target = $region9
    $region8: #{tpu_custom_call.1} parent=1 // pred_region
      %24 = vsyncadd [#allocation6], 0
      %s26 = sshll.u32 %s1, 4
      %s27 = int_to_ptr.hbm [resolvable:$true] %s26
      %s28 = sshll.u32 [#allocation5], 4
      %s29 = int_to_ptr.vmem [resolvable:$true] %s28
      %31 = dma.hbm_to_vmem [thread:$0]  %s27, 256, %s29, [#allocation6]
    $region9: #{tpu_custom_call.1} parent=1 // pred_fallthru
      _
    // Predicated region
    $region10: #{tpu_custom_call.1} parent=1 // pred_check
      _
    $region11: #{tpu_custom_call.1} parent=1 // pred_check_branch
      %33 = sbr.rel (0) target = $region13
    $region12: #{tpu_custom_call.1} parent=1 // pred_region
      %35 = dma.done [#allocation3], 256
    $region13: #{tpu_custom_call.1} parent=1 // pred_fallthru
      _
    // Predicated region
    $region14: #{tpu_custom_call.1} parent=1 // pred_check
      _
    $region15: #{tpu_custom_call.1} parent=1 // pred_check_branch
      %37 = sbr.rel (0) target = $region17
    $region16: #{tpu_custom_call.1} parent=1 // pred_region
      %39 = dma.done [#allocation6], 256
    $region17: #{tpu_custom_call.1} parent=1 // pred_fallthru
      _
    %v40 = vld [vmem:[#allocation5] sm:$0xff]
    %v41 = vld [vmem:[#allocation5 + $0x8] sm:$0xff]
    %v42 = vrcp.pop %v40
    %v43 = vrcp.pop %v41
    %v44 = vmax.f32 %v42, -8.0
    %v45 = vmax.f32 %v43, -8.0
    %v46 = vmin.f32 %v44, 8.0
    %v47 = vmin.f32 %v45, 8.0
    %v48 = vld [vmem:[#allocation2] sm:$0xff]
    %v49 = vld [vmem:[#allocation2 + $0x8] sm:$0xff]
    %v50 = vmul.f32 %v48, %v46
    %v51 = vmul.f32 %v49, %v47
    %52 = vst [vmem:[#allocation7] sm:$0xff] %v50
    %53 = vst [vmem:[#allocation7 + $0x8] sm:$0xff] %v51
    // Predicated region
    $region18: #{tpu_custom_call.1} parent=1 // pred_check
      _
    $region19: #{tpu_custom_call.1} parent=1 // pred_check_branch
      %55 = sbr.rel (0) target = $region21
    $region20: #{tpu_custom_call.1} parent=1 // pred_region
      %57 = vsyncadd [#allocation4], 0
      %s59 = sshll.u32 [#allocation7], 4
      %s60 = int_to_ptr.vmem [resolvable:$true] %s59
      %s61 = sshll.u32 %s2, 4
      %s62 = int_to_ptr.hbm [resolvable:$true] %s61
      %64 = dma.vmem_to_hbm [thread:$0]  %s60, 256, %s62, [#allocation4]
    $region21: #{tpu_custom_call.1} parent=1 // pred_fallthru
      _
    // Predicated region
    $region22: #{tpu_custom_call.1} parent=1 // pred_check
      _
    $region23: #{tpu_custom_call.1} parent=1 // pred_check_branch
      %66 = sbr.rel (0) target = $region25
    $region24: #{tpu_custom_call.1} parent=1 // pred_region
      %68 = dma.done [#allocation4], 256
    $region25: #{tpu_custom_call.1} parent=1 // pred_fallthru
      _
    %69 = vsyncpa [#allocation3], 1
    %70 = vsyncpa [#allocation6], 1
    %71 = vsyncpa [#allocation4], 1

</llo_original>
